<compile_context>
chip_gen: v7x
topology: tpu7x:2x2x1
jax: 0.10.0
libtpu: 0.0.40
codegen_flags: <defaults>
</compile_context>

<pallas_src>
import jax
import jax.numpy as jnp
from jax import lax
from jax.experimental import pallas as pl
from jax.experimental.pallas import tpu as pltpu

EPS = 1e-5


def _make_kernel(N, Cin, H, W, Cb, pad_lanes):
    nhw = N * H * W
    inv_n = 1.0 / float(nhw)
    w1_off = 6
    w3_off = 6 + Cin

    def kernel(x_ref, pos_ref, p_ref, o_ref, scr_ref):
        xf = x_ref[...].astype(jnp.float32)            # (Cin, NHW): lanes = spatial (dense)
        hpos = pos_ref[0:1, :]                         # (1, NHW) h coordinate (f32)
        wpos = pos_ref[1:2, :]                         # (1, NHW) w coordinate (f32)

        # Packed parameters (single small VMEM block).
        g1 = p_ref[0:Cin, 0:1]
        b1 = p_ref[0:Cin, 1:2]
        cb3 = p_ref[0:Cin, 2:3]
        g2 = p_ref[0:Cb, 3:4]
        b2 = p_ref[0:Cb, 4:5]
        cb1 = p_ref[0:Cb, 5:6]
        w1 = p_ref[0:Cb, w1_off:w1_off + Cin]          # (Cb, Cin)
        w3 = p_ref[0:Cin, w3_off:w3_off + 9 * Cb]      # (Cin, 9*Cb)

        # --- norm1 (training-mode batch stats, centered) + ReLU: full-width lane reductions ---
        mean1 = jnp.sum(xf, axis=1, keepdims=True) * inv_n
        d1 = xf - mean1
        var1 = jnp.sum(d1 * d1, axis=1, keepdims=True) * inv_n
        h = jnp.maximum(d1 * (lax.rsqrt(var1 + EPS) * g1) + b1, 0.0)

        # --- bottleneck 1x1 conv: one channel matmul on the MXU ---
        y = jnp.dot(w1, h, preferred_element_type=jnp.float32) + cb1       # (Cb, NHW)

        # --- norm2 (training-mode batch stats, centered) ---
        mean2 = jnp.sum(y, axis=1, keepdims=True) * inv_n
        d2 = y - mean2
        var2 = jnp.sum(d2 * d2, axis=1, keepdims=True) * inv_n
        z = d2 * (lax.rsqrt(var2 + EPS) * g2) + b2                          # (Cb, NHW)

        # --- 3x3 conv (padding=1) as ONE fused im2col matmul (K = 9*Cb) ---
        # z is stored once (lane-aligned) into a flat scratch with lane margins; each tap is a
        # shifted window read of that scratch, and image/row borders are zeroed with h/w masks.
        scr_ref[:, pad_lanes:pad_lanes + nhw] = z

        hv = (hpos >= 1.0, hpos > -1.0, hpos <= float(H - 2))   # dy-1 in {-1, 0, +1}
        wv = (wpos >= 1.0, wpos > -1.0, wpos <= float(W - 2))   # dx-1 in {-1, 0, +1}
        taps = []
        for dy in range(3):
            for dx in range(3):
                delta = (dy - 1) * W + (dx - 1)
                start = pad_lanes + delta
                win = scr_ref[:, start:start + nhw]             # (Cb, NHW) shifted view of z
                taps.append(jnp.where(hv[dy] & wv[dx], win, 0.0))
        zcat = jnp.concatenate(taps, axis=0)                    # (9*Cb, NHW)

        conv = jnp.dot(w3, zcat, preferred_element_type=jnp.float32) + cb3  # (Cin, NHW)

        # --- final ReLU + residual add; lane-dense (NHW last dim) output store ---
        o_ref[...] = (jnp.maximum(conv, 0.0) + xf).astype(o_ref.dtype)

    return kernel


def resnet_piece(x_nchw, params):
    """Forward pass of ResnetPiece.  x_nchw: (N, Cin, H, W) float32 (PyTorch layout)."""
    g1, beta1, w1_oihw, cb1, g2, beta2, w3_oihw, cb3 = params
    N, Cin, H, W = x_nchw.shape
    Cb = w1_oihw.shape[0]
    nhw = N * H * W

    # (N, Cin, H, W) -> (Cin, N*H*W): channels on sublanes, spatial+batch on lanes.
    x2d = jnp.transpose(x_nchw.astype(jnp.float32), (1, 0, 2, 3)).reshape(Cin, nhw)

    # Per-pixel (h, w) coordinates for the 3x3 border masks (compile-time constants).
    hw = jnp.arange(H * W, dtype=jnp.int32)
    pos = jnp.stack([jnp.tile((hw // W).astype(jnp.float32), N),
                     jnp.tile((hw % W).astype(jnp.float32), N)], axis=0)    # (2, NHW)

    # Pack every parameter (BN affine, conv biases, conv weights) into one small VMEM block.
    R = max(Cin, Cb)

    def col(v):
        v = v.reshape(-1, 1).astype(jnp.float32)
        return jnp.pad(v, ((0, R - v.shape[0]), (0, 0)))

    def blk(m):
        m = m.astype(jnp.float32)
        return jnp.pad(m, ((0, R - m.shape[0]), (0, 0)))

    w1_2d = w1_oihw[:, :, 0, 0]                                             # (Cb, Cin)
    w3cat = jnp.transpose(w3_oihw, (0, 2, 3, 1)).reshape(Cin, 9 * Cb)       # (Cin, 9*Cb)
    p_packed = jnp.concatenate(
        [col(g1), col(beta1), col(cb3), col(g2), col(beta2), col(cb1),
         blk(w1_2d), blk(w3cat)], axis=1)                                   # (R, 6+Cin+9*Cb)

    pad_lanes = 128 * pl.cdiv(W + 1, 128)      # lane margin covering the max |shift| = W+1
    kernel = _make_kernel(N, Cin, H, W, Cb, pad_lanes)

    # TODO(synk): at real ResNet sizes, add a grid over N/H ("parallel") with BlockSpec tiling
    # so v7x's second TensorCore is used and VMEM stays within 64 MiB; at this toy size a
    # single invocation is cheaper than the pipeline setup.
    out2d = pl.pallas_call(
        kernel,
        out_shape=jax.ShapeDtypeStruct((Cin, nhw), x_nchw.dtype),
        in_specs=[pl.BlockSpec(memory_space=pltpu.MemorySpace.VMEM)] * 3,
        out_specs=pl.BlockSpec(memory_space=pltpu.MemorySpace.VMEM),
        scratch_shapes=[pltpu.VMEM((Cb, 2 * pad_lanes + nhw), jnp.float32)],
    )(x2d, pos, p_packed)

    return jnp.transpose(out2d.reshape(Cin, N, H, W), (1, 0, 2, 3))         # -> (N, Cin, H, W)


def reference(x, params):
    """Pure-JAX NCHW reference matching the PyTorch forward (training-mode BN)."""
    g1, beta1, w1, cb1, g2, beta2, w3, cb3 = params

    def bn(v, g, b):
        m = jnp.mean(v, axis=(0, 2, 3), keepdims=True)
        var = jnp.mean((v - m) ** 2, axis=(0, 2, 3), keepdims=True)
        return (v - m) * lax.rsqrt(var + EPS) * g.reshape(1, -1, 1, 1) + b.reshape(1, -1, 1, 1)

    h = jax.nn.relu(bn(x, g1, beta1))
    y = lax.conv_general_dilated(h, w1, (1, 1), 'VALID',
                                 dimension_numbers=('NCHW', 'OIHW', 'NCHW'))
    y = y + cb1.reshape(1, -1, 1, 1)
    z = bn(y, g2, beta2)
    c = lax.conv_general_dilated(z, w3, (1, 1), ((1, 1), (1, 1)),
                                 dimension_numbers=('NCHW', 'OIHW', 'NCHW'))
    c = c + cb3.reshape(1, -1, 1, 1)
    return x + jax.nn.relu(c)


if __name__ == "__main__":
    N, Cin, H, W, Cb = 2, 4, 16, 16, 8   # ResnetPiece(input=4, bottleneck_size=8)

    key = jax.random.PRNGKey(0)
    ks = jax.random.split(key, 5)
    x = jax.random.normal(ks[0], (N, Cin, H, W), jnp.float32)

    # Deterministic parameter init (PyTorch-default-style: BN gamma=1, beta=0; scaled normal convs).
    g1 = jnp.ones((Cin,), jnp.float32)
    beta1 = jnp.zeros((Cin,), jnp.float32)
    g2 = jnp.ones((Cb,), jnp.float32)
    beta2 = jnp.zeros((Cb,), jnp.float32)
    w1 = jax.random.normal(ks[1], (Cb, Cin, 1, 1), jnp.float32) / jnp.sqrt(float(Cin))
    cb1 = 0.1 * jax.random.normal(ks[2], (Cb,), jnp.float32)
    w3 = jax.random.normal(ks[3], (Cin, Cb, 3, 3), jnp.float32) / jnp.sqrt(float(Cb * 9))
    cb3 = 0.1 * jax.random.normal(ks[4], (Cin,), jnp.float32)
    params = (g1, beta1, w1, cb1, g2, beta2, w3, cb3)

    out = jax.block_until_ready(resnet_piece(x, params))
    ref = jax.block_until_ready(reference(x, params))

    assert out.shape == (N, Cin, H, W) and out.dtype == jnp.float32
    max_err = float(jnp.max(jnp.abs(out - ref)))
    assert jnp.allclose(out, ref, atol=5e-2, rtol=5e-2), max_err
    print("KERNEL_OK")
</pallas_src>

<mosaic_0001>
module attributes {stable_mosaic.version = 11 : i64} {
  func.func @kernel(%arg0: memref<4x512xf32, #tpu.memory_space<vmem>>, %arg1: memref<2x512xf32, #tpu.memory_space<vmem>>, %arg2: memref<8x82xf32, #tpu.memory_space<vmem>>, %arg3: memref<4x512xf32, #tpu.memory_space<vmem>>, %arg4: memref<8x768xf32, #tpu.memory_space<vmem>>) attributes {dimension_semantics = [], scalar_prefetch = 0 : i64, scratch_operands = 1 : i64, tpu.core_type = #tpu.core_type<tc>} {
    %c0 = arith.constant 0 : index
    %c0_0 = arith.constant 0 : index
    %0 = vector.load %arg0[%c0, %c0_0] : memref<4x512xf32, #tpu.memory_space<vmem>>, vector<4x512xf32>
    %c0_1 = arith.constant 0 : index
    %c0_2 = arith.constant 0 : index
    %1 = vector.load %arg1[%c0_1, %c0_2] : memref<2x512xf32, #tpu.memory_space<vmem>>, vector<1x512xf32>
    %c1 = arith.constant 1 : index
    %c0_3 = arith.constant 0 : index
    %2 = vector.load %arg1[%c1, %c0_3] : memref<2x512xf32, #tpu.memory_space<vmem>>, vector<1x512xf32>
    %c0_4 = arith.constant 0 : index
    %c0_5 = arith.constant 0 : index
    %3 = vector.load %arg2[%c0_4, %c0_5] : memref<8x82xf32, #tpu.memory_space<vmem>>, vector<4x1xf32>
    %c0_6 = arith.constant 0 : index
    %c1_7 = arith.constant 1 : index
    %4 = vector.load %arg2[%c0_6, %c1_7] : memref<8x82xf32, #tpu.memory_space<vmem>>, vector<4x1xf32>
    %c0_8 = arith.constant 0 : index
    %c2 = arith.constant 2 : index
    %5 = vector.load %arg2[%c0_8, %c2] : memref<8x82xf32, #tpu.memory_space<vmem>>, vector<4x1xf32>
    %c0_9 = arith.constant 0 : index
    %c3 = arith.constant 3 : index
    %6 = vector.load %arg2[%c0_9, %c3] : memref<8x82xf32, #tpu.memory_space<vmem>>, vector<8x1xf32>
    %c0_10 = arith.constant 0 : index
    %c4 = arith.constant 4 : index
    %7 = vector.load %arg2[%c0_10, %c4] : memref<8x82xf32, #tpu.memory_space<vmem>>, vector<8x1xf32>
    %c0_11 = arith.constant 0 : index
    %c5 = arith.constant 5 : index
    %8 = vector.load %arg2[%c0_11, %c5] : memref<8x82xf32, #tpu.memory_space<vmem>>, vector<8x1xf32>
    %c0_12 = arith.constant 0 : index
    %c6 = arith.constant 6 : index
    %9 = vector.load %arg2[%c0_12, %c6] : memref<8x82xf32, #tpu.memory_space<vmem>>, vector<8x4xf32>
    %c0_13 = arith.constant 0 : index
    %c10 = arith.constant 10 : index
    %10 = vector.load %arg2[%c0_13, %c10] : memref<8x82xf32, #tpu.memory_space<vmem>>, vector<4x72xf32>
    %cst = arith.constant dense<0.000000e+00> : vector<4xf32>
    %11 = vector.multi_reduction <add>, %0, %cst [1] : vector<4x512xf32> to vector<4xf32>
    %12 = vector.shape_cast %11 : vector<4xf32> to vector<4x1xf32>
    %cst_14 = arith.constant 0.001953125 : f32
    %13 = vector.broadcast %cst_14 : f32 to vector<4x1xf32>
    %14 = arith.mulf %12, %13 : vector<4x1xf32>
    %15 = vector.broadcast %14 : vector<4x1xf32> to vector<4x512xf32>
    %16 = arith.subf %0, %15 : vector<4x512xf32>
    %17 = arith.mulf %16, %16 : vector<4x512xf32>
    %cst_15 = arith.constant dense<0.000000e+00> : vector<4xf32>
    %18 = vector.multi_reduction <add>, %17, %cst_15 [1] : vector<4x512xf32> to vector<4xf32>
    %19 = vector.shape_cast %18 : vector<4xf32> to vector<4x1xf32>
    %cst_16 = arith.constant 0.001953125 : f32
    %20 = vector.broadcast %cst_16 : f32 to vector<4x1xf32>
    %21 = arith.mulf %19, %20 : vector<4x1xf32>
    %cst_17 = arith.constant 9.99999974E-6 : f32
    %22 = vector.broadcast %cst_17 : f32 to vector<4x1xf32>
    %23 = arith.addf %21, %22 : vector<4x1xf32>
    %24 = math.rsqrt %23 : vector<4x1xf32>
    %25 = arith.mulf %24, %3 : vector<4x1xf32>
    %26 = vector.broadcast %25 : vector<4x1xf32> to vector<4x512xf32>
    %27 = arith.mulf %16, %26 : vector<4x512xf32>
    %28 = vector.broadcast %4 : vector<4x1xf32> to vector<4x512xf32>
    %29 = arith.addf %27, %28 : vector<4x512xf32>
    %cst_18 = arith.constant 0.000000e+00 : f32
    %30 = vector.broadcast %cst_18 : f32 to vector<4x512xf32>
    %31 = arith.maximumf %29, %30 : vector<4x512xf32>
    %cst_19 = arith.constant dense<0.000000e+00> : vector<8x512xf32>
    %32 = tpu.matmul %9, %31, %cst_19 {dimension_numbers = #tpu.dot_dimension_numbers<[1], [0], [0], [1], [0, 0, 1, 1], [], []>} : vector<8x4xf32>, vector<4x512xf32>, vector<8x512xf32> -> vector<8x512xf32>
    %33 = vector.broadcast %8 : vector<8x1xf32> to vector<8x512xf32>
    %34 = arith.addf %32, %33 : vector<8x512xf32>
    %cst_20 = arith.constant dense<0.000000e+00> : vector<8xf32>
    %35 = vector.multi_reduction <add>, %34, %cst_20 [1] : vector<8x512xf32> to vector<8xf32>
    %36 = vector.shape_cast %35 : vector<8xf32> to vector<8x1xf32>
    %cst_21 = arith.constant 0.001953125 : f32
    %37 = vector.broadcast %cst_21 : f32 to vector<8x1xf32>
    %38 = arith.mulf %36, %37 : vector<8x1xf32>
    %39 = vector.broadcast %38 : vector<8x1xf32> to vector<8x512xf32>
    %40 = arith.subf %34, %39 : vector<8x512xf32>
    %41 = arith.mulf %40, %40 : vector<8x512xf32>
    %cst_22 = arith.constant dense<0.000000e+00> : vector<8xf32>
    %42 = vector.multi_reduction <add>, %41, %cst_22 [1] : vector<8x512xf32> to vector<8xf32>
    %43 = vector.shape_cast %42 : vector<8xf32> to vector<8x1xf32>
    %cst_23 = arith.constant 0.001953125 : f32
    %44 = vector.broadcast %cst_23 : f32 to vector<8x1xf32>
    %45 = arith.mulf %43, %44 : vector<8x1xf32>
    %cst_24 = arith.constant 9.99999974E-6 : f32
    %46 = vector.broadcast %cst_24 : f32 to vector<8x1xf32>
    %47 = arith.addf %45, %46 : vector<8x1xf32>
    %48 = math.rsqrt %47 : vector<8x1xf32>
    %49 = arith.mulf %48, %6 : vector<8x1xf32>
    %50 = vector.broadcast %49 : vector<8x1xf32> to vector<8x512xf32>
    %51 = arith.mulf %40, %50 : vector<8x512xf32>
    %52 = vector.broadcast %7 : vector<8x1xf32> to vector<8x512xf32>
    %53 = arith.addf %51, %52 : vector<8x512xf32>
    %c0_25 = arith.constant 0 : index
    %c128 = arith.constant 128 : index
    %54 = vector.load %arg4[%c0_25, %c128] : memref<8x768xf32, #tpu.memory_space<vmem>>, vector<8x512xf32>
    tpu.vector_store %arg4[%c0_25, %c128], %53 {strides = array<i32>} : memref<8x768xf32, #tpu.memory_space<vmem>>, vector<8x512xf32>,
    %cst_26 = arith.constant 1.000000e+00 : f32
    %55 = vector.broadcast %cst_26 : f32 to vector<1x512xf32>
    %56 = arith.cmpf oge, %1, %55 : vector<1x512xf32>
    %cst_27 = arith.constant -1.000000e+00 : f32
    %57 = vector.broadcast %cst_27 : f32 to vector<1x512xf32>
    %58 = arith.cmpf ogt, %1, %57 : vector<1x512xf32>
    %cst_28 = arith.constant 1.400000e+01 : f32
    %59 = vector.broadcast %cst_28 : f32 to vector<1x512xf32>
    %60 = arith.cmpf ole, %1, %59 : vector<1x512xf32>
    %cst_29 = arith.constant 1.000000e+00 : f32
    %61 = vector.broadcast %cst_29 : f32 to vector<1x512xf32>
    %62 = arith.cmpf oge, %2, %61 : vector<1x512xf32>
    %cst_30 = arith.constant -1.000000e+00 : f32
    %63 = vector.broadcast %cst_30 : f32 to vector<1x512xf32>
    %64 = arith.cmpf ogt, %2, %63 : vector<1x512xf32>
    %cst_31 = arith.constant 1.400000e+01 : f32
    %65 = vector.broadcast %cst_31 : f32 to vector<1x512xf32>
    %66 = arith.cmpf ole, %2, %65 : vector<1x512xf32>
    %c0_32 = arith.constant 0 : index
    %c111 = arith.constant 111 : index
    %67 = vector.load %arg4[%c0_32, %c111] : memref<8x768xf32, #tpu.memory_space<vmem>>, vector<8x512xf32>
    %68 = arith.andi %56, %62 : vector<1x512xi1>
    %cst_33 = arith.constant 0.000000e+00 : f32
    %69 = vector.shape_cast %68 : vector<1x512xi1> to vector<1x512xi1>
    %70 = vector.broadcast %69 : vector<1x512xi1> to vector<8x512xi1>
    %71 = vector.broadcast %cst_33 : f32 to vector<8x512xf32>
    %72 = arith.select %70, %67, %71 : vector<8x512xi1>, vector<8x512xf32>
    %c0_34 = arith.constant 0 : index
    %c112 = arith.constant 112 : index
    %73 = vector.load %arg4[%c0_34, %c112] : memref<8x768xf32, #tpu.memory_space<vmem>>, vector<8x512xf32>
    %74 = arith.andi %56, %64 : vector<1x512xi1>
    %cst_35 = arith.constant 0.000000e+00 : f32
    %75 = vector.shape_cast %74 : vector<1x512xi1> to vector<1x512xi1>
    %76 = vector.broadcast %75 : vector<1x512xi1> to vector<8x512xi1>
    %77 = vector.broadcast %cst_35 : f32 to vector<8x512xf32>
    %78 = arith.select %76, %73, %77 : vector<8x512xi1>, vector<8x512xf32>
    %c0_36 = arith.constant 0 : index
    %c113 = arith.constant 113 : index
    %79 = vector.load %arg4[%c0_36, %c113] : memref<8x768xf32, #tpu.memory_space<vmem>>, vector<8x512xf32>
    %80 = arith.andi %56, %66 : vector<1x512xi1>
    %cst_37 = arith.constant 0.000000e+00 : f32
    %81 = vector.shape_cast %80 : vector<1x512xi1> to vector<1x512xi1>
    %82 = vector.broadcast %81 : vector<1x512xi1> to vector<8x512xi1>
    %83 = vector.broadcast %cst_37 : f32 to vector<8x512xf32>
    %84 = arith.select %82, %79, %83 : vector<8x512xi1>, vector<8x512xf32>
    %c0_38 = arith.constant 0 : index
    %c127 = arith.constant 127 : index
    %85 = vector.load %arg4[%c0_38, %c127] : memref<8x768xf32, #tpu.memory_space<vmem>>, vector<8x512xf32>
    %86 = arith.andi %58, %62 : vector<1x512xi1>
    %cst_39 = arith.constant 0.000000e+00 : f32
    %87 = vector.shape_cast %86 : vector<1x512xi1> to vector<1x512xi1>
    %88 = vector.broadcast %87 : vector<1x512xi1> to vector<8x512xi1>
    %89 = vector.broadcast %cst_39 : f32 to vector<8x512xf32>
    %90 = arith.select %88, %85, %89 : vector<8x512xi1>, vector<8x512xf32>
    %c0_40 = arith.constant 0 : index
    %c128_41 = arith.constant 128 : index
    %91 = vector.load %arg4[%c0_40, %c128_41] : memref<8x768xf32, #tpu.memory_space<vmem>>, vector<8x512xf32>
    %92 = arith.andi %58, %64 : vector<1x512xi1>
    %cst_42 = arith.constant 0.000000e+00 : f32
    %93 = vector.shape_cast %92 : vector<1x512xi1> to vector<1x512xi1>
    %94 = vector.broadcast %93 : vector<1x512xi1> to vector<8x512xi1>
    %95 = vector.broadcast %cst_42 : f32 to vector<8x512xf32>
    %96 = arith.select %94, %91, %95 : vector<8x512xi1>, vector<8x512xf32>
    %c0_43 = arith.constant 0 : index
    %c129 = arith.constant 129 : index
    %97 = vector.load %arg4[%c0_43, %c129] : memref<8x768xf32, #tpu.memory_space<vmem>>, vector<8x512xf32>
    %98 = arith.andi %58, %66 : vector<1x512xi1>
    %cst_44 = arith.constant 0.000000e+00 : f32
    %99 = vector.shape_cast %98 : vector<1x512xi1> to vector<1x512xi1>
    %100 = vector.broadcast %99 : vector<1x512xi1> to vector<8x512xi1>
    %101 = vector.broadcast %cst_44 : f32 to vector<8x512xf32>
    %102 = arith.select %100, %97, %101 : vector<8x512xi1>, vector<8x512xf32>
    %c0_45 = arith.constant 0 : index
    %c143 = arith.constant 143 : index
    %103 = vector.load %arg4[%c0_45, %c143] : memref<8x768xf32, #tpu.memory_space<vmem>>, vector<8x512xf32>
    %104 = arith.andi %60, %62 : vector<1x512xi1>
    %cst_46 = arith.constant 0.000000e+00 : f32
    %105 = vector.shape_cast %104 : vector<1x512xi1> to vector<1x512xi1>
    %106 = vector.broadcast %105 : vector<1x512xi1> to vector<8x512xi1>
    %107 = vector.broadcast %cst_46 : f32 to vector<8x512xf32>
    %108 = arith.select %106, %103, %107 : vector<8x512xi1>, vector<8x512xf32>
    %c0_47 = arith.constant 0 : index
    %c144 = arith.constant 144 : index
    %109 = vector.load %arg4[%c0_47, %c144] : memref<8x768xf32, #tpu.memory_space<vmem>>, vector<8x512xf32>
    %110 = arith.andi %60, %64 : vector<1x512xi1>
    %cst_48 = arith.constant 0.000000e+00 : f32
    %111 = vector.shape_cast %110 : vector<1x512xi1> to vector<1x512xi1>
    %112 = vector.broadcast %111 : vector<1x512xi1> to vector<8x512xi1>
    %113 = vector.broadcast %cst_48 : f32 to vector<8x512xf32>
    %114 = arith.select %112, %109, %113 : vector<8x512xi1>, vector<8x512xf32>
    %c0_49 = arith.constant 0 : index
    %c145 = arith.constant 145 : index
    %115 = vector.load %arg4[%c0_49, %c145] : memref<8x768xf32, #tpu.memory_space<vmem>>, vector<8x512xf32>
    %116 = arith.andi %60, %66 : vector<1x512xi1>
    %cst_50 = arith.constant 0.000000e+00 : f32
    %117 = vector.shape_cast %116 : vector<1x512xi1> to vector<1x512xi1>
    %118 = vector.broadcast %117 : vector<1x512xi1> to vector<8x512xi1>
    %119 = vector.broadcast %cst_50 : f32 to vector<8x512xf32>
    %120 = arith.select %118, %115, %119 : vector<8x512xi1>, vector<8x512xf32>
    %121 = tpu.concatenate %72, %78, %84, %90, %96, %102, %108, %114, %120 in 0 : vector<8x512xf32>, vector<8x512xf32>, vector<8x512xf32>, vector<8x512xf32>, vector<8x512xf32>, vector<8x512xf32>, vector<8x512xf32>, vector<8x512xf32>, vector<8x512xf32> -> vector<72x512xf32>
    %cst_51 = arith.constant dense<0.000000e+00> : vector<4x512xf32>
    %122 = tpu.matmul %10, %121, %cst_51 {dimension_numbers = #tpu.dot_dimension_numbers<[1], [0], [0], [1], [0, 0, 1, 1], [], []>} : vector<4x72xf32>, vector<72x512xf32>, vector<4x512xf32> -> vector<4x512xf32>
    %123 = vector.broadcast %5 : vector<4x1xf32> to vector<4x512xf32>
    %124 = arith.addf %122, %123 : vector<4x512xf32>
    %cst_52 = arith.constant 0.000000e+00 : f32
    %125 = vector.broadcast %cst_52 : f32 to vector<4x512xf32>
    %126 = arith.maximumf %124, %125 : vector<4x512xf32>
    %127 = arith.addf %126, %0 : vector<4x512xf32>
    %c0_53 = arith.constant 0 : index
    %c0_54 = arith.constant 0 : index
    %128 = vector.load %arg3[%c0_53, %c0_54] : memref<4x512xf32, #tpu.memory_space<vmem>>, vector<4x512xf32>
    tpu.vector_store %arg3[%c0_53, %c0_54], %127 {strides = array<i32>} : memref<4x512xf32, #tpu.memory_space<vmem>>, vector<4x512xf32>,
    return
  }
}

</mosaic_0001>

<llo_original>
// kernel: tpu_custom_call.1
$region0: #{tpu_custom_call.1}
  #allocation0 [shape = 'u32[]', space=smem, size = 0x4, offset = 0x4, fixed_abs, tag = 'smem constant byte address 0x4 - core index']
  #allocation1 [shape = 'u32[144,128]{1,0:T(1,128)}', space=vmem, size = 0x12000, scoped, tag = 'internal scratch']
  #allocation2 [shape = 'f32[8,768]{1,0:T(8,128)}', space=vmem, size = 0x6000, scoped, tag = 'scratch operand']
  %s0 = inlined_call_operand.hbm [shape: f32[4,512], index: 0, kind: input, shape index: {}]
  %s1 = inlined_call_operand.hbm [shape: f32[2,512], index: 1, kind: input, shape index: {}]
  %s2 = inlined_call_operand.hbm [shape: f32[8,82], index: 2, kind: input, shape index: {}]
  %s3 = inlined_call_operand.hbm [shape: f32[4,512], index: 3, kind: output, shape index: {}]
  %s4 = sld [smem:[#allocation0]]
  $region34: #{tpu_custom_call.1} parent=0
    _
  %s6 = ssub.s32 1, %s4
  %s7 = scalar_select 0, %s6, %s4
  $region1: #{tpu_custom_call.1} parent=0
    #allocation3 [shape = 'u8[8192]{0}', space=vmem, size = 0x2000, scoped, tag = 'input window, operand 0, single buffered']
    #allocation4 [shape = 's32[1]{0}', space=sflag, size = 0x4, scoped, tag = 'scoped memory for tpu_custom_call.1']
    #allocation5 [shape = 's32[1]{0}', space=sflag, size = 0x4, scoped, tag = 'scoped memory for tpu_custom_call.1']
    #allocation6 [shape = 'u8[4096]{0}', space=vmem, size = 0x1000, scoped, tag = 'input window, operand 1, single buffered']
    #allocation7 [shape = 's32[1]{0}', space=sflag, size = 0x4, scoped, tag = 'scoped memory for tpu_custom_call.1']
    #allocation8 [shape = 'u8[4096]{0}', space=vmem, size = 0x1000, scoped, tag = 'input window, operand 2, single buffered']
    #allocation9 [shape = 'u8[8192]{0}', space=vmem, size = 0x2000, scoped, tag = 'output window, operand 0, single buffered']
    %8 = vsyncpa [#allocation4], 0
    %9 = vsyncpa [#allocation7], 0
    %10 = vsyncpa [#allocation5], 0
    // Predicated region
    $region2: #{tpu_custom_call.1} parent=1 // pred_check
      _
    $region3: #{tpu_custom_call.1} parent=1 // pred_check_branch
      %12 = sbr.rel (0) target = $region5
    $region4: #{tpu_custom_call.1} parent=1 // pred_region
      %s14 = ssub.s32 256, 256
      %15 = vsyncadd [#allocation4], %s14
      %s17 = sshll.u32 [#allocation3], 4
      %s18 = int_to_ptr.vmem [resolvable:$true] %s17
      %20 = dma.hbm_to_vmem [thread:$0]  %s0, 256, %s18, [#allocation4]
    $region5: #{tpu_custom_call.1} parent=1 // pred_fallthru
      _
    // Predicated region
    $region6: #{tpu_custom_call.1} parent=1 // pred_check
      _
    $region7: #{tpu_custom_call.1} parent=1 // pred_check_branch
      %22 = sbr.rel (0) target = $region9
    $region8: #{tpu_custom_call.1} parent=1 // pred_region
      %s24 = ssub.s32 128, 128
      %25 = vsyncadd [#allocation7], %s24
      %s27 = sshll.u32 [#allocation6], 4
      %s28 = int_to_ptr.vmem [resolvable:$true] %s27
      %30 = dma.hbm_to_vmem [thread:$0]  %s1, 128, %s28, [#allocation7]
    $region9: #{tpu_custom_call.1} parent=1 // pred_fallthru
      _
    // Predicated region
    $region10: #{tpu_custom_call.1} parent=1 // pred_check
      _
    $region11: #{tpu_custom_call.1} parent=1 // pred_check_branch
      %32 = sbr.rel (0) target = $region13
    $region12: #{tpu_custom_call.1} parent=1 // pred_region
      %s34 = ssub.s32 128, 128
      %35 = vsyncadd [#allocation7], %s34
      %s37 = sshll.u32 [#allocation8], 4
      %s38 = int_to_ptr.vmem [resolvable:$true] %s37
      %40 = dma.hbm_to_vmem [thread:$0]  %s2, 128, %s38, [#allocation7]
    $region13: #{tpu_custom_call.1} parent=1 // pred_fallthru
      _
    // Predicated region
    $region14: #{tpu_custom_call.1} parent=1 // pred_check
      _
    $region15: #{tpu_custom_call.1} parent=1 // pred_check_branch
      %42 = sbr.rel (0) target = $region17
    $region16: #{tpu_custom_call.1} parent=1 // pred_region
      %43 = dma.done [#allocation4], 256
    $region17: #{tpu_custom_call.1} parent=1 // pred_fallthru
      _
    // Predicated region
    $region18: #{tpu_custom_call.1} parent=1 // pred_check
      _
    $region19: #{tpu_custom_call.1} parent=1 // pred_check_branch
      %45 = sbr.rel (0) target = $region21
    $region20: #{tpu_custom_call.1} parent=1 // pred_region
      %46 = dma.done [#allocation7], 128
    $region21: #{tpu_custom_call.1} parent=1 // pred_fallthru
      _
    // Predicated region
    $region22: #{tpu_custom_call.1} parent=1 // pred_check
      _
    $region23: #{tpu_custom_call.1} parent=1 // pred_check_branch
      %48 = sbr.rel (0) target = $region25
    $region24: #{tpu_custom_call.1} parent=1 // pred_region
      %49 = dma.done [#allocation7], 128
    $region25: #{tpu_custom_call.1} parent=1 // pred_fallthru
      _
    %v50 = vld [vmem:[#allocation3] sm:$0xff]
    %v51 = vld [vmem:[#allocation3 + $0x8] sm:$0xff]
    %v52 = vld [vmem:[#allocation6] ss:$2 sm:$0xf]
    %s53 = scalar_lea.vmem [#allocation6], 1
    %v54 = vld [vmem:[%s53] ss:$2 sm:$0xf]
    %v55 = vld [vmem:[#allocation8] sm:$0xf]
    %v56 = vld [vmem:[#allocation8] sm:$0xff]
    %v59 = vcombine.high %v50, %v50
    %v60 = vcombine.high %v51, %v51
    %vm63 = vcmask 1043456
    %v64 = vsel %vm63, %v50, 0.0
    %v65 = vsel %vm63, %v59, 0.0
    %v66 = vadd.f32 %v64, %v65
    %v67 = vsel %vm63, %v51, 0.0
    %v68 = vadd.f32 %v66, %v67
    %v69 = vsel %vm63, %v60, 0.0
    %v70 = vadd.f32 %v68, %v69
    %71 = vadd.xlane.f32.xlu0 %v70
    %v72 = vpop.xlane.xlu0 %71
    %v73 = vmul.f32 %v72, 0.001953125
    %v76 = vunpack.c.l.s4 839922192
    %v77 = vunpack.c.0.s8 %v76
    %v78 = vlaneseq
    %v79 = vshrl.u32 %v78, 7
    %v80 = vsub.s32 %v77, %v79
    %v81 = vrot.slane %v73, %v80
    %v83 = vsub.f32 %v50, %v81
    %v84 = vsub.f32 %v51, %v81
    %v85 = vmul.f32 %v83, %v83
    %v86 = vmul.f32 %v84, %v84
    %v89 = vcombine.high %v85, %v85
    %v90 = vcombine.high %v86, %v86
    %v93 = vsel %vm63, %v85, 0.0
    %v94 = vsel %vm63, %v89, 0.0
    %v95 = vadd.f32 %v93, %v94
    %v96 = vsel %vm63, %v86, 0.0
    %v97 = vadd.f32 %v95, %v96
    %v98 = vsel %vm63, %v90, 0.0
    %v99 = vadd.f32 %v97, %v98
    %100 = vadd.xlane.f32.xlu0 %v99
    %v101 = vpop.xlane.xlu0 %100
    %v102 = vmul.f32 %v101, 0.001953125
    %v103 = vadd.f32 %v102, 1e-05
    %v104 = vrsqrt.pop %v103
    %v105 = vmul.f32 %v104, %v55
    %107 = vset.pattern.permute.xlu0 0
    %108 = vperm.xlu0 %107, %v105
    %v109 = vpop.permute.xlu0 %108
    %v111 = vunpack.c.l.s4 839922192
    %v112 = vunpack.c.0.s8 %v111
    %v113 = vlaneseq
    %v114 = vshrl.u32 %v113, 7
    %v115 = vsub.s32 %v112, %v114
    %v116 = vrot.slane %v109, %v115
    %v118 = vmul.f32 %v83, %v116
    %v119 = vmul.f32 %v84, %v116
    %121 = vset.pattern.permute.xlu0 1
    %122 = vperm.xlu0 %121, %v55
    %v123 = vpop.permute.xlu0 %122
    %v125 = vunpack.c.l.s4 839922192
    %v126 = vunpack.c.0.s8 %v125
    %v127 = vlaneseq
    %v128 = vshrl.u32 %v127, 7
    %v129 = vsub.s32 %v126, %v128
    %v130 = vrot.slane %v123, %v129
    %v132 = vadd.f32 %v118, %v130
    %v133 = vadd.f32 %v119, %v130
    %v134 = vmax.f32 %v132, 0.0
    %v135 = vmax.f32 %v133, 0.0
    %137 = vset.pattern.permute.xlu0 5
    %138 = vperm.xlu0 %137, %v56
    %v139 = vpop.permute.xlu0 %138
    %141 = vrot.lane.b32.xlu0 %v56, 122
    %v142 = vpop.permute.xlu0 %141
    %v145 = vcombine.high %v134, %v134
    %v146 = vcombine.high %v135, %v135
    %vm147 = vcmask 31744
    %v148 = vsel %vm147, %v142, 0
    %v150 = vsel %vm63, %v134, 0
    %v152 = vsel %vm63, %v145, 0
    %v154 = vsel %vm63, %v135, 0
    %v156 = vsel %vm63, %v146, 0
    %158 = vmatprep.subr.mxu0 %v152
    %159 = vmatpush1.msra.mxu0 %v150
    %160 = vmatprep.subr.mxu0 0.0
    %161 = vmatpush1.msra.mxu0 0.0
    %162 = vmatprep.subr.mxu0 0.0
    %163 = vmatpush1.msra.mxu0 0.0
    %164 = vmatprep.subr.mxu0 0.0
    %165 = vmatpush1.msra.mxu0 0.0
    %166 = vmatprep.subr.mxu0 0.0
    %167 = vmatpush1.msra.mxu0 0.0
    %168 = vmatprep.subr.mxu0 0.0
    %169 = vmatpush1.msra.mxu0 0.0
    %170 = vmatprep.subr.mxu0 0.0
    %171 = vmatpush1.msra.mxu0 0.0
    %172 = vmatprep.subr.mxu0 0.0
    %173 = vmatpush1.msra.mxu0 0.0
    %174 = vmatprep.subr.mxu0 0.0
    %175 = vmatpush1.msra.mxu0 0.0
    %176 = vmatprep.subr.mxu0 0.0
    %177 = vmatpush1.msra.mxu0 0.0
    %178 = vmatprep.subr.mxu0 0.0
    %179 = vmatpush1.msra.mxu0 0.0
    %180 = vmatprep.subr.mxu0 0.0
    %181 = vmatpush1.msra.mxu0 0.0
    %182 = vmatprep.subr.mxu0 0.0
    %183 = vmatpush1.msra.mxu0 0.0
    %184 = vmatprep.subr.mxu0 0.0
    %185 = vmatpush1.msra.mxu0 0.0
    %186 = vmatprep.subr.mxu0 0.0
    %187 = vmatpush1.msra.mxu0 0.0
    %188 = vmatprep.subr.mxu0 0.0
    %189 = vmatpush1.msra.mxu0 0.0
    %190 = vmatprep.subr.mxu0 0.0
    %191 = vmatpush1.msra.mxu0 0.0
    %192 = vmatprep.subr.mxu0 0.0
    %193 = vmatpush1.msra.mxu0 0.0
    %194 = vmatprep.subr.mxu0 0.0
    %195 = vmatpush1.msra.mxu0 0.0
    %196 = vmatprep.subr.mxu0 0.0
    %197 = vmatpush1.msra.mxu0 0.0
    %198 = vmatprep.subr.mxu0 0.0
    %199 = vmatpush1.msra.mxu0 0.0
    %200 = vmatprep.subr.mxu0 0.0
    %201 = vmatpush1.msra.mxu0 0.0
    %202 = vmatprep.subr.mxu0 0.0
    %203 = vmatpush1.msra.mxu0 0.0
    %204 = vmatprep.subr.mxu0 0.0
    %205 = vmatpush1.msra.mxu0 0.0
    %206 = vmatprep.subr.mxu0 0.0
    %207 = vmatpush1.msra.mxu0 0.0
    %208 = vmatprep.subr.mxu0 0.0
    %209 = vmatpush1.msra.mxu0 0.0
    %210 = vmatprep.subr.mxu0 0.0
    %211 = vmatpush1.msra.mxu0 0.0
    %212 = vmatprep.subr.mxu0 0.0
    %213 = vmatpush1.msra.mxu0 0.0
    %214 = vmatprep.subr.mxu0 0.0
    %215 = vmatpush1.msra.mxu0 0.0
    %216 = vmatprep.subr.mxu0 0.0
    %217 = vmatpush1.msra.mxu0 0.0
    %218 = vmatprep.subr.mxu0 0.0
    %219 = vmatpush1.msra.mxu0 0.0
    %220 = vmatprep.subr.mxu0 0.0
    %221 = vmatpush1.msra.mxu0 0.0
    %222 = vmatprep.mubr.f32.mxu0 0.0
    %223 = vmatmul.mubr.f32.gmra.mrb[0].mxu0 %v148
    %v224 = vpop.f32.mrb[0].mxu0
    %v225 = vadd.f32 %v139, %v224
    %v226 = vpop.f32.mrb[0].mxu0
    %v227 = vadd.f32 %v139, %v226
    %228 = vdwg.mxu0
    %229 = vmatprep.subr.mxu0 %v156
    %230 = vmatpush1.msra.mxu0 %v154
    %231 = vmatprep.subr.mxu0 0.0
    %232 = vmatpush1.msra.mxu0 0.0
    %233 = vmatprep.subr.mxu0 0.0
    %234 = vmatpush1.msra.mxu0 0.0
    %235 = vmatprep.subr.mxu0 0.0
    %236 = vmatpush1.msra.mxu0 0.0
    %237 = vmatprep.subr.mxu0 0.0
    %238 = vmatpush1.msra.mxu0 0.0
    %239 = vmatprep.subr.mxu0 0.0
    %240 = vmatpush1.msra.mxu0 0.0
    %241 = vmatprep.subr.mxu0 0.0
    %242 = vmatpush1.msra.mxu0 0.0
    %243 = vmatprep.subr.mxu0 0.0
    %244 = vmatpush1.msra.mxu0 0.0
    %245 = vmatprep.subr.mxu0 0.0
    %246 = vmatpush1.msra.mxu0 0.0
    %247 = vmatprep.subr.mxu0 0.0
    %248 = vmatpush1.msra.mxu0 0.0
    %249 = vmatprep.subr.mxu0 0.0
    %250 = vmatpush1.msra.mxu0 0.0
    %251 = vmatprep.subr.mxu0 0.0
    %252 = vmatpush1.msra.mxu0 0.0
    %253 = vmatprep.subr.mxu0 0.0
    %254 = vmatpush1.msra.mxu0 0.0
    %255 = vmatprep.subr.mxu0 0.0
    %256 = vmatpush1.msra.mxu0 0.0
    %257 = vmatprep.subr.mxu0 0.0
    %258 = vmatpush1.msra.mxu0 0.0
    %259 = vmatprep.subr.mxu0 0.0
    %260 = vmatpush1.msra.mxu0 0.0
    %261 = vmatprep.subr.mxu0 0.0
    %262 = vmatpush1.msra.mxu0 0.0
    %263 = vmatprep.subr.mxu0 0.0
    %264 = vmatpush1.msra.mxu0 0.0
    %265 = vmatprep.subr.mxu0 0.0
    %266 = vmatpush1.msra.mxu0 0.0
    %267 = vmatprep.subr.mxu0 0.0
    %268 = vmatpush1.msra.mxu0 0.0
    %269 = vmatprep.subr.mxu0 0.0
    %270 = vmatpush1.msra.mxu0 0.0
    %271 = vmatprep.subr.mxu0 0.0
    %272 = vmatpush1.msra.mxu0 0.0
    %273 = vmatprep.subr.mxu0 0.0
    %274 = vmatpush1.msra.mxu0 0.0
    %275 = vmatprep.subr.mxu0 0.0
    %276 = vmatpush1.msra.mxu0 0.0
    %277 = vmatprep.subr.mxu0 0.0
    %278 = vmatpush1.msra.mxu0 0.0
    %279 = vmatprep.subr.mxu0 0.0
    %280 = vmatpush1.msra.mxu0 0.0
    %281 = vmatprep.subr.mxu0 0.0
    %282 = vmatpush1.msra.mxu0 0.0
    %283 = vmatprep.subr.mxu0 0.0
    %284 = vmatpush1.msra.mxu0 0.0
    %285 = vmatprep.subr.mxu0 0.0
    %286 = vmatpush1.msra.mxu0 0.0
    %287 = vmatprep.subr.mxu0 0.0
    %288 = vmatpush1.msra.mxu0 0.0
    %289 = vmatprep.subr.mxu0 0.0
    %290 = vmatpush1.msra.mxu0 0.0
    %291 = vmatprep.subr.mxu0 0.0
    %292 = vmatpush1.msra.mxu0 0.0
    %293 = vmatprep.mubr.f32.mxu0 0.0
    %294 = vmatmul.mubr.f32.gmra.mrb[0].mxu0 %v148
    %v295 = vpop.f32.mrb[0].mxu0
    %v296 = vadd.f32 %v139, %v295
    %v297 = vpop.f32.mrb[0].mxu0
    %v298 = vadd.f32 %v139, %v297
    %299 = vdwg.mxu0
    %v300 = vadd.f32 %v225, %v227
    %v301 = vadd.f32 %v300, %v296
    %v302 = vadd.f32 %v301, %v298
    %303 = vadd.xlane.f32.xlu0 %v302
    %v304 = vpop.xlane.xlu0 %303
    %v305 = vmul.f32 %v304, 0.001953125
    %v306 = vsub.f32 %v225, %v305
    %v307 = vsub.f32 %v227, %v305
    %v308 = vsub.f32 %v296, %v305
    %v309 = vsub.f32 %v298, %v305
    %v310 = vmul.f32 %v306, %v306
    %v311 = vmul.f32 %v307, %v307
    %v312 = vmul.f32 %v308, %v308
    %v313 = vmul.f32 %v309, %v309
    %v314 = vadd.f32 %v310, %v311
    %v315 = vadd.f32 %v314, %v312
    %v316 = vadd.f32 %v315, %v313
    %317 = vadd.xlane.f32.xlu0 %v316
    %v318 = vpop.xlane.xlu0 %317
    %v319 = vmul.f32 %v318, 0.001953125
    %v320 = vadd.f32 %v319, 1e-05
    %v321 = vrsqrt.pop %v320
    %v322 = vmul.f32 %v321, %v56
    %324 = vset.pattern.permute.xlu0 3
    %325 = vperm.xlu0 %324, %v322
    %v326 = vpop.permute.xlu0 %325
    %v328 = vmul.f32 %v306, %v326
    %v329 = vmul.f32 %v307, %v326
    %v330 = vmul.f32 %v308, %v326
    %v331 = vmul.f32 %v309, %v326
    %332 = vset.pattern.permute.xlu0 4
    %333 = vperm.xlu0 %332, %v56
    %v334 = vpop.permute.xlu0 %333
    %v336 = vadd.f32 %v328, %v334
    %v337 = vadd.f32 %v329, %v334
    %v338 = vadd.f32 %v330, %v334
    %v339 = vadd.f32 %v331, %v334
    %340 = vst [vmem:[#allocation2 + $0x8] sm:$0xff] %v336
    %341 = vst [vmem:[#allocation2 + $0x10] sm:$0xff] %v337
    %342 = vst [vmem:[#allocation2 + $0x18] sm:$0xff] %v338
    %343 = vst [vmem:[#allocation2 + $0x20] sm:$0xff] %v339
    %vm344 = vcmp.ge.f32.partialorder %v52, 1.0
    %vm345 = vcmp.gt.f32.partialorder %v52, -1.0
    %vm346 = vcmp.le.f32.partialorder %v52, 14.0
    %vm347 = vcmp.ge.f32.partialorder %v54, 1.0
    %vm348 = vcmp.gt.f32.partialorder %v54, -1.0
    %vm349 = vcmp.le.f32.partialorder %v54, 14.0
    %v350 = vld [vmem:[#allocation2] sm:$0xff]
    %v351 = vld [vmem:[#allocation2 + $0x8] sm:$0xff]
    %v352 = vld [vmem:[#allocation2 + $0x10] sm:$0xff]
    %v353 = vld [vmem:[#allocation2 + $0x18] sm:$0xff]
    %v354 = vld [vmem:[#allocation2 + $0x20] sm:$0xff]
    %vm355 = vmand %vm344, %vm347
    %v356 = vsel %vm355, 1, 0
    %v357 = vlaneseq
    %v358 = vshrl.u32 %v357, 7
    %v359 = vsub.s32 0, %v358
    %v360 = vrot.slane %v356, %v359
    %v361 = vlaneseq
    %v362 = vshrl.u32 %v361, 7
    %v363 = vsub.s32 1, %v362
    %v364 = vrot.slane %v356, %v363
    %v365 = vlaneseq
    %v366 = vshrl.u32 %v365, 7
    %v367 = vsub.s32 2, %v366
    %v368 = vrot.slane %v356, %v367
    %v369 = vlaneseq
    %v370 = vshrl.u32 %v369, 7
    %v371 = vsub.s32 3, %v370
    %v372 = vrot.slane %v356, %v371
    %vm373 = vcmp.eq.s32.totalorder %v360, 1
    %vm374 = vcmp.eq.s32.totalorder %v364, 1
    %vm375 = vcmp.eq.s32.totalorder %v368, 1
    %vm376 = vcmp.eq.s32.totalorder %v372, 1
    %382 = vrot.lane.b32.xlu0 %v350, 17
    %v383 = vpop.permute.xlu0 %382
    %384 = vrot.lane.b32.xlu0 %v351, 17
    %v385 = vpop.permute.xlu0 %384
    %386 = vrot.lane.b32.xlu0 %v352, 17
    %v387 = vpop.permute.xlu0 %386
    %388 = vrot.lane.b32.xlu0 %v353, 17
    %v389 = vpop.permute.xlu0 %388
    %390 = vrot.lane.b32.xlu0 %v354, 17
    %v391 = vpop.permute.xlu0 %390
    %vm392 = vcmask 138240
    %v393 = vsel %vm392, %v383, %v385
    %v394 = vsel %vm392, %v385, %v387
    %v395 = vsel %vm392, %v387, %v389
    %v396 = vsel %vm392, %v389, %v391
    %v401 = vsel %vm373, %v393, 0.0
    %v402 = vsel %vm374, %v394, 0.0
    %v403 = vsel %vm375, %v395, 0.0
    %v404 = vsel %vm376, %v396, 0.0
    %vm405 = vmand %vm344, %vm348
    %v406 = vsel %vm405, 1, 0
    %v407 = vlaneseq
    %v408 = vshrl.u32 %v407, 7
    %v409 = vsub.s32 0, %v408
    %v410 = vrot.slane %v406, %v409
    %v411 = vlaneseq
    %v412 = vshrl.u32 %v411, 7
    %v413 = vsub.s32 1, %v412
    %v414 = vrot.slane %v406, %v413
    %v415 = vlaneseq
    %v416 = vshrl.u32 %v415, 7
    %v417 = vsub.s32 2, %v416
    %v418 = vrot.slane %v406, %v417
    %v419 = vlaneseq
    %v420 = vshrl.u32 %v419, 7
    %v421 = vsub.s32 3, %v420
    %v422 = vrot.slane %v406, %v421
    %vm423 = vcmp.eq.s32.totalorder %v410, 1
    %vm424 = vcmp.eq.s32.totalorder %v414, 1
    %vm425 = vcmp.eq.s32.totalorder %v418, 1
    %vm426 = vcmp.eq.s32.totalorder %v422, 1
    %427 = vrot.lane.b32.xlu0 %v350, 16
    %v428 = vpop.permute.xlu0 %427
    %429 = vrot.lane.b32.xlu0 %v351, 16
    %v430 = vpop.permute.xlu0 %429
    %431 = vrot.lane.b32.xlu0 %v352, 16
    %v432 = vpop.permute.xlu0 %431
    %433 = vrot.lane.b32.xlu0 %v353, 16
    %v434 = vpop.permute.xlu0 %433
    %435 = vrot.lane.b32.xlu0 %v354, 16
    %v436 = vpop.permute.xlu0 %435
    %vm437 = vcmask 130048
    %v438 = vsel %vm437, %v428, %v430
    %v439 = vsel %vm437, %v430, %v432
    %v440 = vsel %vm437, %v432, %v434
    %v441 = vsel %vm437, %v434, %v436
    %v446 = vsel %vm423, %v438, 0.0
    %v447 = vsel %vm424, %v439, 0.0
    %v448 = vsel %vm425, %v440, 0.0
    %v449 = vsel %vm426, %v441, 0.0
    %vm450 = vmand %vm344, %vm349
    %v451 = vsel %vm450, 1, 0
    %v452 = vlaneseq
    %v453 = vshrl.u32 %v452, 7
    %v454 = vsub.s32 0, %v453
    %v455 = vrot.slane %v451, %v454
    %v456 = vlaneseq
    %v457 = vshrl.u32 %v456, 7
    %v458 = vsub.s32 1, %v457
    %v459 = vrot.slane %v451, %v458
    %v460 = vlaneseq
    %v461 = vshrl.u32 %v460, 7
    %v462 = vsub.s32 2, %v461
    %v463 = vrot.slane %v451, %v462
    %v464 = vlaneseq
    %v465 = vshrl.u32 %v464, 7
    %v466 = vsub.s32 3, %v465
    %v467 = vrot.slane %v451, %v466
    %vm468 = vcmp.eq.s32.totalorder %v455, 1
    %vm469 = vcmp.eq.s32.totalorder %v459, 1
    %vm470 = vcmp.eq.s32.totalorder %v463, 1
    %vm471 = vcmp.eq.s32.totalorder %v467, 1
    %472 = vrot.lane.b32.xlu0 %v350, 15
    %v473 = vpop.permute.xlu0 %472
    %474 = vrot.lane.b32.xlu0 %v351, 15
    %v475 = vpop.permute.xlu0 %474
    %476 = vrot.lane.b32.xlu0 %v352, 15
    %v477 = vpop.permute.xlu0 %476
    %478 = vrot.lane.b32.xlu0 %v353, 15
    %v479 = vpop.permute.xlu0 %478
    %480 = vrot.lane.b32.xlu0 %v354, 15
    %v481 = vpop.permute.xlu0 %480
    %vm482 = vcmask 121856
    %v483 = vsel %vm482, %v473, %v475
    %v484 = vsel %vm482, %v475, %v477
    %v485 = vsel %vm482, %v477, %v479
    %v486 = vsel %vm482, %v479, %v481
    %v491 = vsel %vm468, %v483, 0.0
    %v492 = vsel %vm469, %v484, 0.0
    %v493 = vsel %vm470, %v485, 0.0
    %v494 = vsel %vm471, %v486, 0.0
    %vm495 = vmand %vm345, %vm347
    %v496 = vsel %vm495, 1, 0
    %v497 = vlaneseq
    %v498 = vshrl.u32 %v497, 7
    %v499 = vsub.s32 0, %v498
    %v500 = vrot.slane %v496, %v499
    %v501 = vlaneseq
    %v502 = vshrl.u32 %v501, 7
    %v503 = vsub.s32 1, %v502
    %v504 = vrot.slane %v496, %v503
    %v505 = vlaneseq
    %v506 = vshrl.u32 %v505, 7
    %v507 = vsub.s32 2, %v506
    %v508 = vrot.slane %v496, %v507
    %v509 = vlaneseq
    %v510 = vshrl.u32 %v509, 7
    %v511 = vsub.s32 3, %v510
    %v512 = vrot.slane %v496, %v511
    %vm513 = vcmp.eq.s32.totalorder %v500, 1
    %vm514 = vcmp.eq.s32.totalorder %v504, 1
    %vm515 = vcmp.eq.s32.totalorder %v508, 1
    %vm516 = vcmp.eq.s32.totalorder %v512, 1
    %517 = vrot.lane.b32.xlu0 %v350, 1
    %v518 = vpop.permute.xlu0 %517
    %519 = vrot.lane.b32.xlu0 %v351, 1
    %v520 = vpop.permute.xlu0 %519
    %521 = vrot.lane.b32.xlu0 %v352, 1
    %v522 = vpop.permute.xlu0 %521
    %523 = vrot.lane.b32.xlu0 %v353, 1
    %v524 = vpop.permute.xlu0 %523
    %525 = vrot.lane.b32.xlu0 %v354, 1
    %v526 = vpop.permute.xlu0 %525
    %vm527 = vcmask 7168
    %v528 = vsel %vm527, %v518, %v520
    %v529 = vsel %vm527, %v520, %v522
    %v530 = vsel %vm527, %v522, %v524
    %v531 = vsel %vm527, %v524, %v526
    %v536 = vsel %vm513, %v528, 0.0
    %v537 = vsel %vm514, %v529, 0.0
    %v538 = vsel %vm515, %v530, 0.0
    %v539 = vsel %vm516, %v531, 0.0
    %vm540 = vmand %vm345, %vm348
    %v541 = vsel %vm540, 1, 0
    %v542 = vlaneseq
    %v543 = vshrl.u32 %v542, 7
    %v544 = vsub.s32 0, %v543
    %v545 = vrot.slane %v541, %v544
    %v546 = vlaneseq
    %v547 = vshrl.u32 %v546, 7
    %v548 = vsub.s32 1, %v547
    %v549 = vrot.slane %v541, %v548
    %v550 = vlaneseq
    %v551 = vshrl.u32 %v550, 7
    %v552 = vsub.s32 2, %v551
    %v553 = vrot.slane %v541, %v552
    %v554 = vlaneseq
    %v555 = vshrl.u32 %v554, 7
    %v556 = vsub.s32 3, %v555
    %v557 = vrot.slane %v541, %v556
    %vm558 = vcmp.eq.s32.totalorder %v545, 1
    %vm559 = vcmp.eq.s32.totalorder %v549, 1
    %vm560 = vcmp.eq.s32.totalorder %v553, 1
    %vm561 = vcmp.eq.s32.totalorder %v557, 1
    %v562 = vsel %vm558, %v351, 0.0
    %v563 = vsel %vm559, %v352, 0.0
    %v564 = vsel %vm560, %v353, 0.0
    %v565 = vsel %vm561, %v354, 0.0
    %v566 = vld [vmem:[#allocation2 + $0x8] sm:$0xff]
    %v567 = vld [vmem:[#allocation2 + $0x10] sm:$0xff]
    %v568 = vld [vmem:[#allocation2 + $0x18] sm:$0xff]
    %v569 = vld [vmem:[#allocation2 + $0x20] sm:$0xff]
    %v570 = vld [vmem:[#allocation2 + $0x28] sm:$0xff]
    %vm571 = vmand %vm345, %vm349
    %v572 = vsel %vm571, 1, 0
    %v573 = vlaneseq
    %v574 = vshrl.u32 %v573, 7
    %v575 = vsub.s32 0, %v574
    %v576 = vrot.slane %v572, %v575
    %v577 = vlaneseq
    %v578 = vshrl.u32 %v577, 7
    %v579 = vsub.s32 1, %v578
    %v580 = vrot.slane %v572, %v579
    %v581 = vlaneseq
    %v582 = vshrl.u32 %v581, 7
    %v583 = vsub.s32 2, %v582
    %v584 = vrot.slane %v572, %v583
    %v585 = vlaneseq
    %v586 = vshrl.u32 %v585, 7
    %v587 = vsub.s32 3, %v586
    %v588 = vrot.slane %v572, %v587
    %vm589 = vcmp.eq.s32.totalorder %v576, 1
    %vm590 = vcmp.eq.s32.totalorder %v580, 1
    %vm591 = vcmp.eq.s32.totalorder %v584, 1
    %vm592 = vcmp.eq.s32.totalorder %v588, 1
    %598 = vrot.lane.b32.xlu0 %v566, 127
    %v599 = vpop.permute.xlu0 %598
    %600 = vrot.lane.b32.xlu0 %v567, 127
    %v601 = vpop.permute.xlu0 %600
    %602 = vrot.lane.b32.xlu0 %v568, 127
    %v603 = vpop.permute.xlu0 %602
    %604 = vrot.lane.b32.xlu0 %v569, 127
    %v605 = vpop.permute.xlu0 %604
    %606 = vrot.lane.b32.xlu0 %v570, 127
    %v607 = vpop.permute.xlu0 %606
    %vm608 = vcmask 1039360
    %v609 = vsel %vm608, %v599, %v601
    %v610 = vsel %vm608, %v601, %v603
    %v611 = vsel %vm608, %v603, %v605
    %v612 = vsel %vm608, %v605, %v607
    %v617 = vsel %vm589, %v609, 0.0
    %v618 = vsel %vm590, %v610, 0.0
    %v619 = vsel %vm591, %v611, 0.0
    %v620 = vsel %vm592, %v612, 0.0
    %vm621 = vmand %vm346, %vm347
    %v622 = vsel %vm621, 1, 0
    %v623 = vlaneseq
    %v624 = vshrl.u32 %v623, 7
    %v625 = vsub.s32 0, %v624
    %v626 = vrot.slane %v622, %v625
    %v627 = vlaneseq
    %v628 = vshrl.u32 %v627, 7
    %v629 = vsub.s32 1, %v628
    %v630 = vrot.slane %v622, %v629
    %v631 = vlaneseq
    %v632 = vshrl.u32 %v631, 7
    %v633 = vsub.s32 2, %v632
    %v634 = vrot.slane %v622, %v633
    %v635 = vlaneseq
    %v636 = vshrl.u32 %v635, 7
    %v637 = vsub.s32 3, %v636
    %v638 = vrot.slane %v622, %v637
    %vm639 = vcmp.eq.s32.totalorder %v626, 1
    %vm640 = vcmp.eq.s32.totalorder %v630, 1
    %vm641 = vcmp.eq.s32.totalorder %v634, 1
    %vm642 = vcmp.eq.s32.totalorder %v638, 1
    %643 = vrot.lane.b32.xlu0 %v566, 113
    %v644 = vpop.permute.xlu0 %643
    %645 = vrot.lane.b32.xlu0 %v567, 113
    %v646 = vpop.permute.xlu0 %645
    %647 = vrot.lane.b32.xlu0 %v568, 113
    %v648 = vpop.permute.xlu0 %647
    %649 = vrot.lane.b32.xlu0 %v569, 113
    %v650 = vpop.permute.xlu0 %649
    %651 = vrot.lane.b32.xlu0 %v570, 113
    %v652 = vpop.permute.xlu0 %651
    %vm653 = vcmask 924672
    %v654 = vsel %vm653, %v644, %v646
    %v655 = vsel %vm653, %v646, %v648
    %v656 = vsel %vm653, %v648, %v650
    %v657 = vsel %vm653, %v650, %v652
    %v662 = vsel %vm639, %v654, 0.0
    %v663 = vsel %vm640, %v655, 0.0
    %v664 = vsel %vm641, %v656, 0.0
    %v665 = vsel %vm642, %v657, 0.0
    %vm666 = vmand %vm346, %vm348
    %v667 = vsel %vm666, 1, 0
    %v668 = vlaneseq
    %v669 = vshrl.u32 %v668, 7
    %v670 = vsub.s32 0, %v669
    %v671 = vrot.slane %v667, %v670
    %v672 = vlaneseq
    %v673 = vshrl.u32 %v672, 7
    %v674 = vsub.s32 1, %v673
    %v675 = vrot.slane %v667, %v674
    %v676 = vlaneseq
    %v677 = vshrl.u32 %v676, 7
    %v678 = vsub.s32 2, %v677
    %v679 = vrot.slane %v667, %v678
    %v680 = vlaneseq
    %v681 = vshrl.u32 %v680, 7
    %v682 = vsub.s32 3, %v681
    %v683 = vrot.slane %v667, %v682
    %vm684 = vcmp.eq.s32.totalorder %v671, 1
    %vm685 = vcmp.eq.s32.totalorder %v675, 1
    %vm686 = vcmp.eq.s32.totalorder %v679, 1
    %vm687 = vcmp.eq.s32.totalorder %v683, 1
    %688 = vrot.lane.b32.xlu0 %v566, 112
    %v689 = vpop.permute.xlu0 %688
    %690 = vrot.lane.b32.xlu0 %v567, 112
    %v691 = vpop.permute.xlu0 %690
    %692 = vrot.lane.b32.xlu0 %v568, 112
    %v693 = vpop.permute.xlu0 %692
    %694 = vrot.lane.b32.xlu0 %v569, 112
    %v695 = vpop.permute.xlu0 %694
    %696 = vrot.lane.b32.xlu0 %v570, 112
    %v697 = vpop.permute.xlu0 %696
    %vm698 = vcmask 916480
    %v699 = vsel %vm698, %v689, %v691
    %v700 = vsel %vm698, %v691, %v693
    %v701 = vsel %vm698, %v693, %v695
    %v702 = vsel %vm698, %v695, %v697
    %v707 = vsel %vm684, %v699, 0.0
    %v708 = vsel %vm685, %v700, 0.0
    %v709 = vsel %vm686, %v701, 0.0
    %v710 = vsel %vm687, %v702, 0.0
    %vm711 = vmand %vm346, %vm349
    %v712 = vsel %vm711, 1, 0
    %v713 = vlaneseq
    %v714 = vshrl.u32 %v713, 7
    %v715 = vsub.s32 0, %v714
    %v716 = vrot.slane %v712, %v715
    %v717 = vlaneseq
    %v718 = vshrl.u32 %v717, 7
    %v719 = vsub.s32 1, %v718
    %v720 = vrot.slane %v712, %v719
    %v721 = vlaneseq
    %v722 = vshrl.u32 %v721, 7
    %v723 = vsub.s32 2, %v722
    %v724 = vrot.slane %v712, %v723
    %v725 = vlaneseq
    %v726 = vshrl.u32 %v725, 7
    %v727 = vsub.s32 3, %v726
    %v728 = vrot.slane %v712, %v727
    %vm729 = vcmp.eq.s32.totalorder %v716, 1
    %vm730 = vcmp.eq.s32.totalorder %v720, 1
    %vm731 = vcmp.eq.s32.totalorder %v724, 1
    %vm732 = vcmp.eq.s32.totalorder %v728, 1
    %733 = vrot.lane.b32.xlu0 %v566, 111
    %v734 = vpop.permute.xlu0 %733
    %735 = vrot.lane.b32.xlu0 %v567, 111
    %v736 = vpop.permute.xlu0 %735
    %737 = vrot.lane.b32.xlu0 %v568, 111
    %v738 = vpop.permute.xlu0 %737
    %739 = vrot.lane.b32.xlu0 %v569, 111
    %v740 = vpop.permute.xlu0 %739
    %741 = vrot.lane.b32.xlu0 %v570, 111
    %v742 = vpop.permute.xlu0 %741
    %vm743 = vcmask 908288
    %v744 = vsel %vm743, %v734, %v736
    %v745 = vsel %vm743, %v736, %v738
    %v746 = vsel %vm743, %v738, %v740
    %v747 = vsel %vm743, %v740, %v742
    %v752 = vsel %vm729, %v744, 0.0
    %v753 = vsel %vm730, %v745, 0.0
    %v754 = vsel %vm731, %v746, 0.0
    %v755 = vsel %vm732, %v747, 0.0
    %756 = vset.pattern.permute.xlu0 2
    %757 = vperm.xlu0 %756, %v55
    %v758 = vpop.permute.xlu0 %757
    %760 = vrot.lane.b32.xlu0 %v55, 118
    %v761 = vpop.permute.xlu0 %760
    %vm762 = vcmask 588800
    %v763 = vsel %vm762, %v761, 0
    %765 = vmatprep.subr.mxu0 %v402
    %766 = vmatpush1.msra.mxu0 %v401
    %767 = vmatprep.subr.mxu0 %v447
    %768 = vmatpush1.msra.mxu0 %v446
    %769 = vmatprep.subr.mxu0 %v492
    %770 = vmatpush1.msra.mxu0 %v491
    %771 = vmatprep.subr.mxu0 %v537
    %772 = vmatpush1.msra.mxu0 %v536
    %773 = vmatprep.subr.mxu0 %v563
    %774 = vmatpush1.msra.mxu0 %v562
    %775 = vmatprep.subr.mxu0 %v618
    %776 = vmatpush1.msra.mxu0 %v617
    %777 = vmatprep.subr.mxu0 %v663
    %778 = vmatpush1.msra.mxu0 %v662
    %779 = vmatprep.subr.mxu0 %v708
    %780 = vmatpush1.msra.mxu0 %v707
    %781 = vmatprep.subr.mxu0 %v753
    %782 = vmatpush1.msra.mxu0 %v752
    %783 = vmatprep.subr.mxu0 0.0
    %784 = vmatpush1.msra.mxu0 0.0
    %785 = vmatprep.subr.mxu0 0.0
    %786 = vmatpush1.msra.mxu0 0.0
    %787 = vmatprep.subr.mxu0 0.0
    %788 = vmatpush1.msra.mxu0 0.0
    %789 = vmatprep.subr.mxu0 0.0
    %790 = vmatpush1.msra.mxu0 0.0
    %791 = vmatprep.subr.mxu0 0.0
    %792 = vmatpush1.msra.mxu0 0.0
    %793 = vmatprep.subr.mxu0 0.0
    %794 = vmatpush1.msra.mxu0 0.0
    %795 = vmatprep.subr.mxu0 0.0
    %796 = vmatpush1.msra.mxu0 0.0
    %797 = vmatprep.subr.mxu0 0.0
    %798 = vmatpush1.msra.mxu0 0.0
    %799 = vmatprep.subr.mxu0 0.0
    %800 = vmatpush1.msra.mxu0 0.0
    %801 = vmatprep.subr.mxu0 0.0
    %802 = vmatpush1.msra.mxu0 0.0
    %803 = vmatprep.subr.mxu0 0.0
    %804 = vmatpush1.msra.mxu0 0.0
    %805 = vmatprep.subr.mxu0 0.0
    %806 = vmatpush1.msra.mxu0 0.0
    %807 = vmatprep.subr.mxu0 0.0
    %808 = vmatpush1.msra.mxu0 0.0
    %809 = vmatprep.subr.mxu0 0.0
    %810 = vmatpush1.msra.mxu0 0.0
    %811 = vmatprep.subr.mxu0 0.0
    %812 = vmatpush1.msra.mxu0 0.0
    %813 = vmatprep.subr.mxu0 0.0
    %814 = vmatpush1.msra.mxu0 0.0
    %815 = vmatprep.subr.mxu0 0.0
    %816 = vmatpush1.msra.mxu0 0.0
    %817 = vmatprep.subr.mxu0 0.0
    %818 = vmatpush1.msra.mxu0 0.0
    %819 = vmatprep.subr.mxu0 0.0
    %820 = vmatpush1.msra.mxu0 0.0
    %821 = vmatprep.subr.mxu0 0.0
    %822 = vmatpush1.msra.mxu0 0.0
    %823 = vmatprep.subr.mxu0 0.0
    %824 = vmatpush1.msra.mxu0 0.0
    %825 = vmatprep.subr.mxu0 0.0
    %826 = vmatpush1.msra.mxu0 0.0
    %827 = vmatprep.subr.mxu0 0.0
    %828 = vmatpush1.msra.mxu0 0.0
    %829 = vmatprep.mubr.f32.mxu0 0.0
    %830 = vmatmul.mubr.f32.gmra.mrb[0].mxu0 %v763
    %v831 = vpop.f32.mrb[0].mxu0
    %v832 = vadd.f32 %v758, %v831
    %v833 = vpop.f32.mrb[0].mxu0
    %v834 = vadd.f32 %v758, %v833
    %835 = vdwg.mxu0
    %836 = vmatprep.subr.mxu0 %v404
    %837 = vmatpush1.msra.mxu0 %v403
    %838 = vmatprep.subr.mxu0 %v449
    %839 = vmatpush1.msra.mxu0 %v448
    %840 = vmatprep.subr.mxu0 %v494
    %841 = vmatpush1.msra.mxu0 %v493
    %842 = vmatprep.subr.mxu0 %v539
    %843 = vmatpush1.msra.mxu0 %v538
    %844 = vmatprep.subr.mxu0 %v565
    %845 = vmatpush1.msra.mxu0 %v564
    %846 = vmatprep.subr.mxu0 %v620
    %847 = vmatpush1.msra.mxu0 %v619
    %848 = vmatprep.subr.mxu0 %v665
    %849 = vmatpush1.msra.mxu0 %v664
    %850 = vmatprep.subr.mxu0 %v710
    %851 = vmatpush1.msra.mxu0 %v709
    %852 = vmatprep.subr.mxu0 %v755
    %853 = vmatpush1.msra.mxu0 %v754
    %854 = vmatprep.subr.mxu0 0.0
    %855 = vmatpush1.msra.mxu0 0.0
    %856 = vmatprep.subr.mxu0 0.0
    %857 = vmatpush1.msra.mxu0 0.0
    %858 = vmatprep.subr.mxu0 0.0
    %859 = vmatpush1.msra.mxu0 0.0
    %860 = vmatprep.subr.mxu0 0.0
    %861 = vmatpush1.msra.mxu0 0.0
    %862 = vmatprep.subr.mxu0 0.0
    %863 = vmatpush1.msra.mxu0 0.0
    %864 = vmatprep.subr.mxu0 0.0
    %865 = vmatpush1.msra.mxu0 0.0
    %866 = vmatprep.subr.mxu0 0.0
    %867 = vmatpush1.msra.mxu0 0.0
    %868 = vmatprep.subr.mxu0 0.0
    %869 = vmatpush1.msra.mxu0 0.0
    %870 = vmatprep.subr.mxu0 0.0
    %871 = vmatpush1.msra.mxu0 0.0
    %872 = vmatprep.subr.mxu0 0.0
    %873 = vmatpush1.msra.mxu0 0.0
    %874 = vmatprep.subr.mxu0 0.0
    %875 = vmatpush1.msra.mxu0 0.0
    %876 = vmatprep.subr.mxu0 0.0
    %877 = vmatpush1.msra.mxu0 0.0
    %878 = vmatprep.subr.mxu0 0.0
    %879 = vmatpush1.msra.mxu0 0.0
    %880 = vmatprep.subr.mxu0 0.0
    %881 = vmatpush1.msra.mxu0 0.0
    %882 = vmatprep.subr.mxu0 0.0
    %883 = vmatpush1.msra.mxu0 0.0
    %884 = vmatprep.subr.mxu0 0.0
    %885 = vmatpush1.msra.mxu0 0.0
    %886 = vmatprep.subr.mxu0 0.0
    %887 = vmatpush1.msra.mxu0 0.0
    %888 = vmatprep.subr.mxu0 0.0
    %889 = vmatpush1.msra.mxu0 0.0
    %890 = vmatprep.subr.mxu0 0.0
    %891 = vmatpush1.msra.mxu0 0.0
    %892 = vmatprep.subr.mxu0 0.0
    %893 = vmatpush1.msra.mxu0 0.0
    %894 = vmatprep.subr.mxu0 0.0
    %895 = vmatpush1.msra.mxu0 0.0
    %896 = vmatprep.subr.mxu0 0.0
    %897 = vmatpush1.msra.mxu0 0.0
    %898 = vmatprep.subr.mxu0 0.0
    %899 = vmatpush1.msra.mxu0 0.0
    %900 = vmatprep.mubr.f32.mxu0 0.0
    %901 = vmatmul.mubr.f32.gmra.mrb[0].mxu0 %v763
    %v902 = vpop.f32.mrb[0].mxu0
    %v903 = vadd.f32 %v758, %v902
    %v904 = vpop.f32.mrb[0].mxu0
    %v905 = vadd.f32 %v758, %v904
    %906 = vdwg.mxu0
    %v907 = vmax.f32 %v832, 0.0
    %v908 = vmax.f32 %v834, 0.0
    %v909 = vmax.f32 %v903, 0.0
    %v910 = vmax.f32 %v905, 0.0
    %v911 = vadd.f32 %v907, %v50
    %v912 = vadd.f32 %v908, %v59
    %v913 = vadd.f32 %v909, %v51
    %v914 = vadd.f32 %v910, %v60
    %v919 = vcombine.low %v911, %v912
    %v920 = vcombine.low %v913, %v914
    %923 = vst [vmem:[#allocation9] sm:$0xff] %v919
    %924 = vst [vmem:[#allocation9 + $0x8] sm:$0xff] %v920
    // Predicated region
    $region26: #{tpu_custom_call.1} parent=1 // pred_check
      _
    $region27: #{tpu_custom_call.1} parent=1 // pred_check_branch
      %926 = sbr.rel (0) target = $region29
    $region28: #{tpu_custom_call.1} parent=1 // pred_region
      %s928 = ssub.s32 256, 256
      %929 = vsyncadd [#allocation5], %s928
      %s931 = sshll.u32 [#allocation9], 4
      %s932 = int_to_ptr.vmem [resolvable:$true] %s931
      %934 = dma.vmem_to_hbm [thread:$0]  %s932, 256, %s3, [#allocation5]
    $region29: #{tpu_custom_call.1} parent=1 // pred_fallthru
      _
    // Predicated region
    $region30: #{tpu_custom_call.1} parent=1 // pred_check
      _
    $region31: #{tpu_custom_call.1} parent=1 // pred_check_branch
      %936 = sbr.rel (0) target = $region33
    $region32: #{tpu_custom_call.1} parent=1 // pred_region
      %937 = dma.done [#allocation5], 256
    $region33: #{tpu_custom_call.1} parent=1 // pred_fallthru
      _
    %938 = vsyncpa [#allocation4], 1
    %939 = vsyncpa [#allocation7], 1
    %940 = vsyncpa [#allocation5], 1

</llo_original>
